<compile_context>
chip_gen: v6e
topology: v6e:2x2x1
jax: 0.10.0
libtpu: 0.0.40
codegen_flags: <defaults>
</compile_context>

<pallas_src>
import jax
import jax.numpy as jnp
from jax.experimental import pallas as pl
from jax.experimental.pallas import tpu as pltpu


def _round_up(x, m):
    return (x + m - 1) // m * m


def _tensorcores_per_device():
    """Best-effort TC-per-chip detection: only affects tiling, never math."""
    try:
        kind = jax.devices()[0].device_kind.lower()
    except Exception:
        return 1
    # v7x exposes 2 TensorCores per chip; v5e/v6e expose 1.
    return 2 if "v7" in kind else 1


def _pick_tm(n_rows, block_rows, num_tensorcores):
    """Batch tile: multiple of 8, as large as block_rows.  Only split the
    batch into >=num_tensorcores equal grid steps when the chip actually has
    multiple TensorCores (v7x); on 1-TC chips use one maximal tile."""
    np8 = _round_up(max(n_rows, 1), 8)
    tm = min(_round_up(block_rows, 8), np8)
    if num_tensorcores > 1:
        steps = pl.cdiv(np8, tm)
        # Even work split across cores: step count a multiple of the TC count.
        steps = _round_up(max(steps, num_tensorcores), num_tensorcores)
        tm = _round_up(pl.cdiv(np8, steps), 8)
    return tm


def _make_mlp_kernel(num_layers, act, matmul_dtype):
    if act == "ReLU":
        act_fn = lambda v: jnp.maximum(v, 0.0)
    elif act == "GELU":
        # tanh-approx GELU: transcendental goes to the EUP (its own bundle
        # slot) instead of VPU erf-polynomial work on the critical slot.
        act_fn = lambda v: jax.nn.gelu(v, approximate=True)
    else:
        raise ValueError(f"unknown activation {act!r}")

    def kernel(*refs):
        # refs = (x_ref, w0, b0, w1, b1, ..., o_ref)
        x_ref = refs[0]
        o_ref = refs[-1]
        params = refs[1:-1]

        h = x_ref[...].astype(matmul_dtype)        # MXU-native operand dtype
        for layer in range(num_layers):
            w = params[2 * layer][...]             # already matmul_dtype
            b = params[2 * layer + 1][...]         # f32 bias
            acc = jnp.dot(h, w, preferred_element_type=jnp.float32)
            acc = acc + b.astype(jnp.float32)      # f32 epilogue (v5e-safe)
            if layer != num_layers - 1:
                h = act_fn(acc).astype(matmul_dtype)
            else:
                h = acc
        o_ref[...] = h.astype(o_ref.dtype)

    return kernel


def mlp_forward(x, weights, biases, *, act="ReLU", block_rows=2048,
                matmul_dtype=jnp.bfloat16, num_tensorcores=None):
    """x: (N, in_ch). weights[i]: (d_in_i, d_out_i) [= nn.Linear weight.T].
    biases[i]: (1, d_out_i) (or (d_out_i,)).  Returns (N, d_out_last)."""
    N, in_ch = x.shape
    num_layers = len(weights)
    out_dim = weights[-1].shape[1]
    assert weights[0].shape[0] == in_ch

    if num_tensorcores is None:
        num_tensorcores = _tensorcores_per_device()

    md = matmul_dtype if matmul_dtype is not None else x.dtype
    # One-time cast of the (tiny) weights to the MXU operand dtype.  In
    # production do this at parameter-init / checkpoint-load time.
    pw = [w.astype(md) for w in weights]
    pb = [b.reshape(1, -1).astype(jnp.float32) for b in biases]

    tm = _pick_tm(N, block_rows, num_tensorcores)
    grid = (pl.cdiv(N, tm),)        # non-divisible grids: last block is masked

    kernel = _make_mlp_kernel(num_layers, act, md)

    # x block: last dim == full extent (legal even though 35 is not 128-aligned).
    in_specs = [pl.BlockSpec((tm, in_ch), lambda i: (i, 0))]
    for w, b in zip(pw, pb):
        # Full-extent resident blocks (constant index_map).  Weights total a
        # few KiB so default double-buffering is free; use
        # pipeline_mode=pl.Buffered(1) here if the MLP ever grows.
        in_specs.append(pl.BlockSpec(w.shape, lambda i: (0, 0)))
        in_specs.append(pl.BlockSpec(b.shape, lambda i: (0, 0)))
    # Narrow output: masked lane stores beat 8x HBM write amplification + slice.
    out_spec = pl.BlockSpec((tm, out_dim), lambda i: (i, 0))

    # Advisory cost estimate on REAL dims.
    nbytes = lambda a: a.size * a.dtype.itemsize
    flops = 2 * N * sum(w.shape[0] * w.shape[1] for w in weights)
    transcendentals = (0 if act == "ReLU"
                       else N * sum(w.shape[1] for w in weights[:-1]))
    bytes_accessed = (nbytes(x) + N * out_dim * x.dtype.itemsize
                      + sum(nbytes(w) for w in pw) + sum(nbytes(b) for b in pb))

    out = pl.pallas_call(
        kernel,
        out_shape=jax.ShapeDtypeStruct((N, out_dim), x.dtype),
        grid_spec=pltpu.PrefetchScalarGridSpec(
            num_scalar_prefetch=0,
            grid=grid,
            in_specs=in_specs,
            out_specs=out_spec,
        ),
        compiler_params=pltpu.CompilerParams(
            # Batch steps are independent -> parallel.  On v7x, verify in the
            # profile that both TCs pick up steps; fall back to
            # pltpu.CORE_PARALLEL / core_map if they do not.
            dimension_semantics=("parallel",),
            # Live bytes per step are < 2 MiB at tm=2048; 32 MiB also leaves
            # headroom under v7x's 64 MiB physical VMEM (keep <= ~48 MiB there).
            vmem_limit_bytes=32 * 1024 * 1024,
        ),
        cost_estimate=pl.CostEstimate(
            flops=flops,
            transcendentals=transcendentals,
            bytes_accessed=bytes_accessed,
        ),
    )(x, *[p for wb in zip(pw, pb) for p in wb])

    return out


def init_mlp_params(key, in_ch, hidden_layer_dims, dtype=jnp.float32):
    """nn.Linear-style init (uniform +-1/sqrt(fan_in)); weights stored as
    (d_in, d_out) so the kernel computes x @ W."""
    dims = [in_ch] + list(hidden_layer_dims)
    weights, biases = [], []
    for li in range(len(hidden_layer_dims)):
        d_in, d_out = dims[li], dims[li + 1]
        key, kw, kb = jax.random.split(key, 3)
        bound = 1.0 / float(jnp.sqrt(d_in))
        weights.append(jax.random.uniform(kw, (d_in, d_out), dtype, -bound, bound))
        biases.append(jax.random.uniform(kb, (1, d_out), dtype, -bound, bound))
    return weights, biases


def mlp_reference(x, weights, biases, act="ReLU", matmul_dtype=None):
    """Pure-JAX reference.  matmul_dtype mirrors the kernel's MXU operand
    dtype (bf16 operands, f32 accumulation / bias / activation)."""
    act_fn = ((lambda v: jnp.maximum(v, 0.0)) if act == "ReLU"
              else (lambda v: jax.nn.gelu(v, approximate=True)))
    h = x.astype(jnp.float32)
    for i, (w, b) in enumerate(zip(weights, biases)):
        hm = h if matmul_dtype is None else h.astype(matmul_dtype)
        wm = w if matmul_dtype is None else w.astype(matmul_dtype)
        h = jnp.dot(hm, wm, preferred_element_type=jnp.float32)
        h = h + b.reshape(1, -1).astype(jnp.float32)
        if i != len(weights) - 1:
            h = act_fn(h)
    return h.astype(x.dtype)


if __name__ == "__main__":
    # Module config: in_ch=35 (per docstring), hidden_layer_dims=[64, 32, 16],
    # default activation = ReLU.
    in_ch = 35
    hidden_layer_dims = [64, 32, 16]
    N = 200

    key = jax.random.PRNGKey(0)
    key, kx = jax.random.split(key)
    x = jax.random.normal(kx, (N, in_ch), jnp.float32)
    weights, biases = init_mlp_params(key, in_ch, hidden_layer_dims)

    # 1) Default config: one maximal batch tile on 1-TC chips (even split on v7x).
    out = jax.block_until_ready(mlp_forward(x, weights, biases, act="ReLU"))
    # 2) Small tile: multi-step grid with a ragged (masked) last block.
    out_small = jax.block_until_ready(
        mlp_forward(x, weights, biases, act="ReLU", block_rows=64))

    ref_bf16 = mlp_reference(x, weights, biases, act="ReLU",
                             matmul_dtype=jnp.bfloat16)
    ref_f32 = mlp_reference(x, weights, biases, act="ReLU", matmul_dtype=None)

    assert out.shape == (N, hidden_layer_dims[-1]), out.shape
    assert out_small.shape == (N, hidden_layer_dims[-1]), out_small.shape

    err = float(jnp.max(jnp.abs(out - ref_bf16)))
    assert jnp.allclose(out, ref_bf16, atol=1e-3, rtol=1e-3), err
    err_s = float(jnp.max(jnp.abs(out_small - ref_bf16)))
    assert jnp.allclose(out_small, ref_bf16, atol=1e-3, rtol=1e-3), err_s
    # Informational only: deviation of the bf16-MXU path from full-f32 math.
    _bf16_vs_f32 = float(jnp.max(jnp.abs(out - ref_f32)))

    print("KERNEL_OK")
</pallas_src>

<mosaic_0001>
module attributes {stable_mosaic.version = 11 : i64} {
  func.func @kernel(%arg0: i32, %arg1: memref<200x35xf32, #tpu.memory_space<vmem>>, %arg2: memref<35x64xbf16, #tpu.memory_space<vmem>>, %arg3: memref<1x64xf32, #tpu.memory_space<vmem>>, %arg4: memref<64x32xbf16, #tpu.memory_space<vmem>>, %arg5: memref<1x32xf32, #tpu.memory_space<vmem>>, %arg6: memref<32x16xbf16, #tpu.memory_space<vmem>>, %arg7: memref<1x16xf32, #tpu.memory_space<vmem>>, %arg8: memref<200x16xf32, #tpu.memory_space<vmem>>) attributes {dimension_semantics = [#tpu.dimension_semantics<parallel>], iteration_bounds = array<i64: 1>, scalar_prefetch = 0 : i64, scratch_operands = 0 : i64, tpu.core_type = #tpu.core_type<tc>, window_params = [{transform_indices = @transform_0, window_bounds = array<i64: 200, 35>}, {pipeline_mode = #tpu.pipeline_mode<synchronous>, transform_indices = @transform_1, window_bounds = array<i64: 35, 64>}, {pipeline_mode = #tpu.pipeline_mode<synchronous>, transform_indices = @transform_2, window_bounds = array<i64: 1, 64>}, {pipeline_mode = #tpu.pipeline_mode<synchronous>, transform_indices = @transform_3, window_bounds = array<i64: 64, 32>}, {pipeline_mode = #tpu.pipeline_mode<synchronous>, transform_indices = @transform_4, window_bounds = array<i64: 1, 32>}, {pipeline_mode = #tpu.pipeline_mode<synchronous>, transform_indices = @transform_5, window_bounds = array<i64: 32, 16>}, {pipeline_mode = #tpu.pipeline_mode<synchronous>, transform_indices = @transform_6, window_bounds = array<i64: 1, 16>}, {transform_indices = @transform_7, window_bounds = array<i64: 200, 16>}]} {
    %c0 = arith.constant 0 : index
    %c0_0 = arith.constant 0 : index
    %0 = vector.load %arg1[%c0, %c0_0] : memref<200x35xf32, #tpu.memory_space<vmem>>, vector<200x35xf32>
    %1 = arith.truncf %0 : vector<200x35xf32> to vector<200x35xbf16>
    %c0_1 = arith.constant 0 : index
    %c0_2 = arith.constant 0 : index
    %2 = vector.load %arg2[%c0_1, %c0_2] : memref<35x64xbf16, #tpu.memory_space<vmem>>, vector<35x64xbf16>
    %c0_3 = arith.constant 0 : index
    %c0_4 = arith.constant 0 : index
    %3 = vector.load %arg3[%c0_3, %c0_4] : memref<1x64xf32, #tpu.memory_space<vmem>>, vector<1x64xf32>
    %cst = arith.constant dense<0.000000e+00> : vector<200x64xf32>
    %4 = tpu.matmul %1, %2, %cst {dimension_numbers = #tpu.dot_dimension_numbers<[1], [0], [0], [1], [0, 0, 1, 1], [], []>} : vector<200x35xbf16>, vector<35x64xbf16>, vector<200x64xf32> -> vector<200x64xf32>
    %5 = vector.broadcast %3 : vector<1x64xf32> to vector<200x64xf32>
    %6 = arith.addf %4, %5 : vector<200x64xf32>
    %cst_5 = arith.constant 0.000000e+00 : f32
    %7 = vector.broadcast %cst_5 : f32 to vector<200x64xf32>
    %8 = arith.maximumf %6, %7 : vector<200x64xf32>
    %9 = arith.truncf %8 : vector<200x64xf32> to vector<200x64xbf16>
    %c0_6 = arith.constant 0 : index
    %c0_7 = arith.constant 0 : index
    %10 = vector.load %arg4[%c0_6, %c0_7] : memref<64x32xbf16, #tpu.memory_space<vmem>>, vector<64x32xbf16>
    %c0_8 = arith.constant 0 : index
    %c0_9 = arith.constant 0 : index
    %11 = vector.load %arg5[%c0_8, %c0_9] : memref<1x32xf32, #tpu.memory_space<vmem>>, vector<1x32xf32>
    %cst_10 = arith.constant dense<0.000000e+00> : vector<200x32xf32>
    %12 = tpu.matmul %9, %10, %cst_10 {dimension_numbers = #tpu.dot_dimension_numbers<[1], [0], [0], [1], [0, 0, 1, 1], [], []>} : vector<200x64xbf16>, vector<64x32xbf16>, vector<200x32xf32> -> vector<200x32xf32>
    %13 = vector.broadcast %11 : vector<1x32xf32> to vector<200x32xf32>
    %14 = arith.addf %12, %13 : vector<200x32xf32>
    %cst_11 = arith.constant 0.000000e+00 : f32
    %15 = vector.broadcast %cst_11 : f32 to vector<200x32xf32>
    %16 = arith.maximumf %14, %15 : vector<200x32xf32>
    %17 = arith.truncf %16 : vector<200x32xf32> to vector<200x32xbf16>
    %c0_12 = arith.constant 0 : index
    %c0_13 = arith.constant 0 : index
    %18 = vector.load %arg6[%c0_12, %c0_13] : memref<32x16xbf16, #tpu.memory_space<vmem>>, vector<32x16xbf16>
    %c0_14 = arith.constant 0 : index
    %c0_15 = arith.constant 0 : index
    %19 = vector.load %arg7[%c0_14, %c0_15] : memref<1x16xf32, #tpu.memory_space<vmem>>, vector<1x16xf32>
    %cst_16 = arith.constant dense<0.000000e+00> : vector<200x16xf32>
    %20 = tpu.matmul %17, %18, %cst_16 {dimension_numbers = #tpu.dot_dimension_numbers<[1], [0], [0], [1], [0, 0, 1, 1], [], []>} : vector<200x32xbf16>, vector<32x16xbf16>, vector<200x16xf32> -> vector<200x16xf32>
    %21 = vector.broadcast %19 : vector<1x16xf32> to vector<200x16xf32>
    %22 = arith.addf %20, %21 : vector<200x16xf32>
    %c0_17 = arith.constant 0 : index
    %c0_18 = arith.constant 0 : index
    %23 = vector.load %arg8[%c0_17, %c0_18] : memref<200x16xf32, #tpu.memory_space<vmem>>, vector<200x16xf32>
    tpu.vector_store %arg8[%c0_17, %c0_18], %22 {strides = array<i32>} : memref<200x16xf32, #tpu.memory_space<vmem>>, vector<200x16xf32>,
    return
  }
  func.func @transform_0(%arg0: i32) -> (i32, i32) {
    %c0_i32 = arith.constant 0 : i32
    %c0_i32_0 = arith.constant 0 : i32
    return %arg0, %c0_i32 : i32, i32
  }
  func.func @transform_1(%arg0: i32) -> (i32, i32) {
    %c0_i32 = arith.constant 0 : i32
    %c0_i32_0 = arith.constant 0 : i32
    %c0_i32_1 = arith.constant 0 : i32
    return %c0_i32, %c0_i32_0 : i32, i32
  }
  func.func @transform_2(%arg0: i32) -> (i32, i32) {
    %c0_i32 = arith.constant 0 : i32
    %c0_i32_0 = arith.constant 0 : i32
    %c0_i32_1 = arith.constant 0 : i32
    return %c0_i32, %c0_i32_0 : i32, i32
  }
  func.func @transform_3(%arg0: i32) -> (i32, i32) {
    %c0_i32 = arith.constant 0 : i32
    %c0_i32_0 = arith.constant 0 : i32
    %c0_i32_1 = arith.constant 0 : i32
    return %c0_i32, %c0_i32_0 : i32, i32
  }
  func.func @transform_4(%arg0: i32) -> (i32, i32) {
    %c0_i32 = arith.constant 0 : i32
    %c0_i32_0 = arith.constant 0 : i32
    %c0_i32_1 = arith.constant 0 : i32
    return %c0_i32, %c0_i32_0 : i32, i32
  }
  func.func @transform_5(%arg0: i32) -> (i32, i32) {
    %c0_i32 = arith.constant 0 : i32
    %c0_i32_0 = arith.constant 0 : i32
    %c0_i32_1 = arith.constant 0 : i32
    return %c0_i32, %c0_i32_0 : i32, i32
  }
  func.func @transform_6(%arg0: i32) -> (i32, i32) {
    %c0_i32 = arith.constant 0 : i32
    %c0_i32_0 = arith.constant 0 : i32
    %c0_i32_1 = arith.constant 0 : i32
    return %c0_i32, %c0_i32_0 : i32, i32
  }
  func.func @transform_7(%arg0: i32) -> (i32, i32) {
    %c0_i32 = arith.constant 0 : i32
    %c0_i32_0 = arith.constant 0 : i32
    return %arg0, %c0_i32 : i32, i32
  }
}

</mosaic_0001>

<llo_original>
// kernel: tpu_custom_call.1
$region0: #{tpu_custom_call.1}
  #allocation0 [shape = 'u32[]', space=smem, size = 0x4, offset = 0x4, fixed_abs, tag = 'smem constant byte address 0x4 - core index']
  #allocation1 [shape = 'u32[144,128]{1,0:T(1,128)}', space=vmem, size = 0x12000, scoped, tag = 'internal scratch']
  %s0 = inlined_call_operand.vmem [shape: f32[200,35], index: 0, kind: input, shape index: {}]
  %s1 = inlined_call_operand.vmem [shape: bf16[35,64], index: 1, kind: input, shape index: {}]
  %s2 = inlined_call_operand.vmem [shape: f32[1,64], index: 2, kind: input, shape index: {}]
  %s3 = inlined_call_operand.vmem [shape: bf16[64,32], index: 3, kind: input, shape index: {}]
  %s4 = inlined_call_operand.vmem [shape: f32[1,32], index: 4, kind: input, shape index: {}]
  %s5 = inlined_call_operand.vmem [shape: bf16[32,16], index: 5, kind: input, shape index: {}]
  %s6 = inlined_call_operand.vmem [shape: f32[1,16], index: 6, kind: input, shape index: {}]
  %s7 = inlined_call_operand.vmem [shape: f32[200,16], index: 7, kind: output, shape index: {}]
  %s8 = sld [smem:[#allocation0]]
  $region38: #{tpu_custom_call.1} parent=0
    _
  %s10 = ssub.s32 1, %s8
  %s11 = scalar_select 0, %s10, %s8
  // Predicated region
  $region2: #{tpu_custom_call.1} parent=0 // pred_check
    _
  $region3: #{tpu_custom_call.1} parent=0 // pred_check_branch
    %13 = sbr.rel (0) target = $region5
  $region4: #{tpu_custom_call.1} parent=0 // pred_region
    _
  $region5: #{tpu_custom_call.1} parent=0 // pred_fallthru
    _
  // Predicated region
  $region6: #{tpu_custom_call.1} parent=0 // pred_check
    _
  $region7: #{tpu_custom_call.1} parent=0 // pred_check_branch
    %15 = sbr.rel (0) target = $region9
  $region8: #{tpu_custom_call.1} parent=0 // pred_region
    _
  $region9: #{tpu_custom_call.1} parent=0 // pred_fallthru
    _
  // Predicated region
  $region10: #{tpu_custom_call.1} parent=0 // pred_check
    _
  $region11: #{tpu_custom_call.1} parent=0 // pred_check_branch
    %17 = sbr.rel (0) target = $region13
  $region12: #{tpu_custom_call.1} parent=0 // pred_region
    _
  $region13: #{tpu_custom_call.1} parent=0 // pred_fallthru
    _
  // Predicated region
  $region14: #{tpu_custom_call.1} parent=0 // pred_check
    _
  $region15: #{tpu_custom_call.1} parent=0 // pred_check_branch
    %19 = sbr.rel (0) target = $region17
  $region16: #{tpu_custom_call.1} parent=0 // pred_region
    _
  $region17: #{tpu_custom_call.1} parent=0 // pred_fallthru
    _
  // Predicated region
  $region18: #{tpu_custom_call.1} parent=0 // pred_check
    _
  $region19: #{tpu_custom_call.1} parent=0 // pred_check_branch
    %21 = sbr.rel (0) target = $region21
  $region20: #{tpu_custom_call.1} parent=0 // pred_region
    _
  $region21: #{tpu_custom_call.1} parent=0 // pred_fallthru
    _
  // Predicated region
  $region22: #{tpu_custom_call.1} parent=0 // pred_check
    _
  $region23: #{tpu_custom_call.1} parent=0 // pred_check_branch
    %23 = sbr.rel (0) target = $region25
  $region24: #{tpu_custom_call.1} parent=0 // pred_region
    _
  $region25: #{tpu_custom_call.1} parent=0 // pred_fallthru
    _
  // Predicated region
  $region26: #{tpu_custom_call.1} parent=0 // pred_check
    _
  $region27: #{tpu_custom_call.1} parent=0 // pred_check_branch
    %25 = sbr.rel (0) target = $region29
  $region28: #{tpu_custom_call.1} parent=0 // pred_region
    _
  $region29: #{tpu_custom_call.1} parent=0 // pred_fallthru
    _
  %v27 = vld [vmem:[%s0] sm:$0xff]
  %v28 = vld [vmem:[%s0 + $0x8] sm:$0xff]
  %v29 = vld [vmem:[%s0 + $0x10] sm:$0xff]
  %v30 = vld [vmem:[%s0 + $0x18] sm:$0xff]
  %v31 = vld [vmem:[%s0 + $0x20] sm:$0xff]
  %v32 = vld [vmem:[%s0 + $0x28] sm:$0xff]
  %v33 = vld [vmem:[%s0 + $0x30] sm:$0xff]
  %v34 = vld [vmem:[%s0 + $0x38] sm:$0xff]
  %v35 = vld [vmem:[%s0 + $0x40] sm:$0xff]
  %v36 = vld [vmem:[%s0 + $0x48] sm:$0xff]
  %v37 = vld [vmem:[%s0 + $0x50] sm:$0xff]
  %v38 = vld [vmem:[%s0 + $0x58] sm:$0xff]
  %v39 = vld [vmem:[%s0 + $0x60] sm:$0xff]
  %v40 = vld [vmem:[%s0 + $0x68] sm:$0xff]
  %v41 = vld [vmem:[%s0 + $0x70] sm:$0xff]
  %v42 = vld [vmem:[%s0 + $0x78] sm:$0xff]
  %v43 = vld [vmem:[%s0 + $0x80] sm:$0xff]
  %v44 = vld [vmem:[%s0 + $0x88] sm:$0xff]
  %v45 = vld [vmem:[%s0 + $0x90] sm:$0xff]
  %v46 = vld [vmem:[%s0 + $0x98] sm:$0xff]
  %v47 = vld [vmem:[%s0 + $0xa0] sm:$0xff]
  %v48 = vld [vmem:[%s0 + $0xa8] sm:$0xff]
  %v49 = vld [vmem:[%s0 + $0xb0] sm:$0xff]
  %v50 = vld [vmem:[%s0 + $0xb8] sm:$0xff]
  %v51 = vld [vmem:[%s0 + $0xc0] sm:$0xff]
  %v52 = vpack.c.bf16 %v28, %v27
  %v53 = vpack.c.bf16 %v30, %v29
  %v54 = vpack.c.bf16 %v32, %v31
  %v55 = vpack.c.bf16 %v34, %v33
  %v56 = vpack.c.bf16 %v36, %v35
  %v57 = vpack.c.bf16 %v38, %v37
  %v58 = vpack.c.bf16 %v40, %v39
  %v59 = vpack.c.bf16 %v42, %v41
  %v60 = vpack.c.bf16 %v44, %v43
  %v61 = vpack.c.bf16 %v46, %v45
  %v62 = vpack.c.bf16 %v48, %v47
  %v63 = vpack.c.bf16 %v50, %v49
  %v64 = vpack.c.bf16 %v51, %v51
  %v65 = vld [vmem:[%s1] sm:$0xf]
  %v66 = vld [vmem:[%s1 + $0x4] sm:$0xf]
  %v67 = vld [vmem:[%s1 + $0x8] sm:$0xf]
  %v68 = vld [vmem:[%s1 + $0xc] sm:$0xf]
  %v69 = vld [vmem:[%s1 + $0x10] sm:$0x3]
  %v70 = vld [vmem:[%s2] sm:$0x1]
  %v72 = vlaneseq
  %v73 = vshrl.u32 %v72, 7
  %v74 = vsub.s32 0, %v73
  %v75 = vrot.slane %v70, %v74
  %v82 = vunpack.c.l.b16 %v65
  %v83 = vunpack.c.l.b16 %v66
  %v84 = vunpack.c.l.b16 %v67
  %v85 = vunpack.c.l.b16 %v68
  %v86 = vunpack.c.l.b16 %v69
  %v87 = vpack.c.b16 %v83, %v82
  %v88 = vpack.c.b16 %v85, %v84
  %v89 = vpack.c.b16 %v86, %v86
  %vm92 = vcmask 285696
  %v94 = vsel %vm92, %v52, 0
  %v97 = vsel %vm92, %v53, 0
  %v100 = vsel %vm92, %v54, 0
  %v103 = vsel %vm92, %v55, 0
  %v106 = vsel %vm92, %v56, 0
  %v109 = vsel %vm92, %v57, 0
  %v112 = vsel %vm92, %v58, 0
  %v115 = vsel %vm92, %v59, 0
  %v118 = vsel %vm92, %v60, 0
  %v121 = vsel %vm92, %v61, 0
  %v124 = vsel %vm92, %v62, 0
  %v127 = vsel %vm92, %v63, 0
  %v130 = vsel %vm92, %v64, 0
  %vm132 = vcmask 1040384
  %vm133 = vcmask 1041408
  %v134 = vsel %vm132, 4294967295, 65535
  %v135 = vsel %vm133, %v134, 0
  %v137 = vand.u32 %v89, %v135
  %139 = vmatprep.subr.bf16.mxu0 0
  %140 = vmatpush1.bf16.msra.mxu0 0
  %141 = vmatprep.subr.bf16.mxu0 0
  %142 = vmatpush1.bf16.msra.mxu0 0
  %143 = vmatprep.subr.bf16.mxu0 0
  %144 = vmatpush1.bf16.msra.mxu0 0
  %145 = vmatprep.subr.bf16.mxu0 0
  %146 = vmatpush1.bf16.msra.mxu0 0
  %147 = vmatprep.subr.bf16.mxu0 0
  %148 = vmatpush1.bf16.msra.mxu0 0
  %149 = vmatprep.subr.bf16.mxu0 0
  %150 = vmatpush1.bf16.msra.mxu0 %v137
  %151 = vmatprep.subr.bf16.mxu0 0
  %152 = vmatpush1.bf16.msra.mxu0 %v88
  %153 = vmatprep.subr.bf16.mxu0 0
  %154 = vmatpush1.bf16.msra.mxu0 %v87
  %155 = vmatprep.subr.bf16.mxu0 0
  %156 = vmatpush2.bf16.msra.mxu0 0
  %157 = vmatprep.subr.bf16.mxu0 0
  %158 = vmatpush2.bf16.msra.mxu0 0
  %159 = vmatprep.subr.bf16.mxu0 0
  %160 = vmatpush2.bf16.msra.mxu0 0
  %161 = vmatprep.subr.bf16.mxu0 0
  %162 = vmatpush2.bf16.msra.mxu0 0
  %163 = vmatprep.subr.bf16.mxu0 0
  %164 = vmatpush2.bf16.msra.mxu0 0
  %165 = vmatprep.subr.bf16.mxu0 0
  %166 = vmatpush2.bf16.msra.mxu0 0
  %167 = vmatprep.subr.bf16.mxu0 0
  %168 = vmatpush2.bf16.msra.mxu0 0
  %169 = vmatprep.subr.bf16.mxu0 0
  %170 = vmatpush2.bf16.msra.mxu0 0
  %171 = vmatprep.mubr.bf16.mxu0 0
  %172 = vmatmul.mubr.bf16.gmra.mxu0 %v94
  %v173 = vpop.f32.mrf.mxu0
  %v174 = vadd.f32 %v75, %v173
  %v175 = vpop.f32.mrf.mxu0
  %v176 = vpop.f32.mrf.mxu0
  %v177 = vadd.f32 %v75, %v176
  %v178 = vpop.f32.mrf.mxu0
  %179 = vmatprep.mubr.bf16.mxu0 0
  %180 = vmatmul.mubr.bf16.gmra.mxu0 %v97
  %v181 = vpop.f32.mrf.mxu0
  %v182 = vadd.f32 %v75, %v181
  %v183 = vpop.f32.mrf.mxu0
  %v184 = vpop.f32.mrf.mxu0
  %v185 = vadd.f32 %v75, %v184
  %v186 = vpop.f32.mrf.mxu0
  %187 = vmatprep.mubr.bf16.mxu0 0
  %188 = vmatmul.mubr.bf16.gmra.mxu0 %v100
  %v189 = vpop.f32.mrf.mxu0
  %v190 = vadd.f32 %v75, %v189
  %v191 = vpop.f32.mrf.mxu0
  %v192 = vpop.f32.mrf.mxu0
  %v193 = vadd.f32 %v75, %v192
  %v194 = vpop.f32.mrf.mxu0
  %195 = vmatprep.mubr.bf16.mxu0 0
  %196 = vmatmul.mubr.bf16.gmra.mxu0 %v103
  %v197 = vpop.f32.mrf.mxu0
  %v198 = vadd.f32 %v75, %v197
  %v199 = vpop.f32.mrf.mxu0
  %v200 = vpop.f32.mrf.mxu0
  %v201 = vadd.f32 %v75, %v200
  %v202 = vpop.f32.mrf.mxu0
  %203 = vmatprep.mubr.bf16.mxu0 0
  %204 = vmatmul.mubr.bf16.gmra.mxu0 %v106
  %v205 = vpop.f32.mrf.mxu0
  %v206 = vadd.f32 %v75, %v205
  %v207 = vpop.f32.mrf.mxu0
  %v208 = vpop.f32.mrf.mxu0
  %v209 = vadd.f32 %v75, %v208
  %v210 = vpop.f32.mrf.mxu0
  %211 = vmatprep.mubr.bf16.mxu0 0
  %212 = vmatmul.mubr.bf16.gmra.mxu0 %v109
  %v213 = vpop.f32.mrf.mxu0
  %v214 = vadd.f32 %v75, %v213
  %v215 = vpop.f32.mrf.mxu0
  %v216 = vpop.f32.mrf.mxu0
  %v217 = vadd.f32 %v75, %v216
  %v218 = vpop.f32.mrf.mxu0
  %219 = vmatprep.mubr.bf16.mxu0 0
  %220 = vmatmul.mubr.bf16.gmra.mxu0 %v112
  %v221 = vpop.f32.mrf.mxu0
  %v222 = vadd.f32 %v75, %v221
  %v223 = vpop.f32.mrf.mxu0
  %v224 = vpop.f32.mrf.mxu0
  %v225 = vadd.f32 %v75, %v224
  %v226 = vpop.f32.mrf.mxu0
  %227 = vmatprep.mubr.bf16.mxu0 0
  %228 = vmatmul.mubr.bf16.gmra.mxu0 %v115
  %v229 = vpop.f32.mrf.mxu0
  %v230 = vadd.f32 %v75, %v229
  %v231 = vpop.f32.mrf.mxu0
  %v232 = vpop.f32.mrf.mxu0
  %v233 = vadd.f32 %v75, %v232
  %v234 = vpop.f32.mrf.mxu0
  %235 = vmatprep.mubr.bf16.mxu0 0
  %236 = vmatmul.mubr.bf16.gmra.mxu0 %v118
  %v237 = vpop.f32.mrf.mxu0
  %v238 = vadd.f32 %v75, %v237
  %v239 = vpop.f32.mrf.mxu0
  %v240 = vpop.f32.mrf.mxu0
  %v241 = vadd.f32 %v75, %v240
  %v242 = vpop.f32.mrf.mxu0
  %243 = vmatprep.mubr.bf16.mxu0 0
  %244 = vmatmul.mubr.bf16.gmra.mxu0 %v121
  %v245 = vpop.f32.mrf.mxu0
  %v246 = vadd.f32 %v75, %v245
  %v247 = vpop.f32.mrf.mxu0
  %v248 = vpop.f32.mrf.mxu0
  %v249 = vadd.f32 %v75, %v248
  %v250 = vpop.f32.mrf.mxu0
  %251 = vmatprep.mubr.bf16.mxu0 0
  %252 = vmatmul.mubr.bf16.gmra.mxu0 %v124
  %v253 = vpop.f32.mrf.mxu0
  %v254 = vadd.f32 %v75, %v253
  %v255 = vpop.f32.mrf.mxu0
  %v256 = vpop.f32.mrf.mxu0
  %v257 = vadd.f32 %v75, %v256
  %v258 = vpop.f32.mrf.mxu0
  %259 = vmatprep.mubr.bf16.mxu0 0
  %260 = vmatmul.mubr.bf16.gmra.mxu0 %v127
  %v261 = vpop.f32.mrf.mxu0
  %v262 = vadd.f32 %v75, %v261
  %v263 = vpop.f32.mrf.mxu0
  %v264 = vpop.f32.mrf.mxu0
  %v265 = vadd.f32 %v75, %v264
  %v266 = vpop.f32.mrf.mxu0
  %267 = vmatprep.mubr.bf16.mxu0 0
  %268 = vmatmul.mubr.bf16.gmra.mxu0 %v130
  %v269 = vpop.f32.mrf.mxu0
  %v270 = vadd.f32 %v75, %v269
  %v271 = vpop.f32.mrf.mxu0
  %v272 = vpop.f32.mrf.mxu0
  %v273 = vpop.f32.mrf.mxu0
  %274 = vdwg.mxu0
  %v275 = vmax.f32 %v174, 0.0
  %v276 = vmax.f32 %v177, 0.0
  %v277 = vmax.f32 %v182, 0.0
  %v278 = vmax.f32 %v185, 0.0
  %v279 = vmax.f32 %v190, 0.0
  %v280 = vmax.f32 %v193, 0.0
  %v281 = vmax.f32 %v198, 0.0
  %v282 = vmax.f32 %v201, 0.0
  %v283 = vmax.f32 %v206, 0.0
  %v284 = vmax.f32 %v209, 0.0
  %v285 = vmax.f32 %v214, 0.0
  %v286 = vmax.f32 %v217, 0.0
  %v287 = vmax.f32 %v222, 0.0
  %v288 = vmax.f32 %v225, 0.0
  %v289 = vmax.f32 %v230, 0.0
  %v290 = vmax.f32 %v233, 0.0
  %v291 = vmax.f32 %v238, 0.0
  %v292 = vmax.f32 %v241, 0.0
  %v293 = vmax.f32 %v246, 0.0
  %v294 = vmax.f32 %v249, 0.0
  %v295 = vmax.f32 %v254, 0.0
  %v296 = vmax.f32 %v257, 0.0
  %v297 = vmax.f32 %v262, 0.0
  %v298 = vmax.f32 %v265, 0.0
  %v299 = vmax.f32 %v270, 0.0
  %v300 = vpack.c.bf16 %v276, %v275
  %v301 = vpack.c.bf16 %v278, %v277
  %v302 = vpack.c.bf16 %v280, %v279
  %v303 = vpack.c.bf16 %v282, %v281
  %v304 = vpack.c.bf16 %v284, %v283
  %v305 = vpack.c.bf16 %v286, %v285
  %v306 = vpack.c.bf16 %v288, %v287
  %v307 = vpack.c.bf16 %v290, %v289
  %v308 = vpack.c.bf16 %v292, %v291
  %v309 = vpack.c.bf16 %v294, %v293
  %v310 = vpack.c.bf16 %v296, %v295
  %v311 = vpack.c.bf16 %v298, %v297
  %v312 = vpack.c.bf16 %v299, %v299
  %v313 = vld [vmem:[%s3] sm:$0xf]
  %v314 = vld [vmem:[%s3 + $0x4] sm:$0xf]
  %v315 = vld [vmem:[%s3 + $0x8] sm:$0xf]
  %v316 = vld [vmem:[%s3 + $0xc] sm:$0xf]
  %v317 = vld [vmem:[%s3 + $0x10] sm:$0xf]
  %v318 = vld [vmem:[%s3 + $0x14] sm:$0xf]
  %v319 = vld [vmem:[%s3 + $0x18] sm:$0xf]
  %v320 = vld [vmem:[%s3 + $0x1c] sm:$0xf]
  %v321 = vld [vmem:[%s4] sm:$0x1]
  %v323 = vlaneseq
  %v324 = vshrl.u32 %v323, 7
  %v325 = vsub.s32 0, %v324
  %v326 = vrot.slane %v321, %v325
  %v336 = vunpack.c.l.b16 %v313
  %v337 = vunpack.c.l.b16 %v314
  %v338 = vunpack.c.l.b16 %v315
  %v339 = vunpack.c.l.b16 %v316
  %v340 = vunpack.c.l.b16 %v317
  %v341 = vunpack.c.l.b16 %v318
  %v342 = vunpack.c.l.b16 %v319
  %v343 = vunpack.c.l.b16 %v320
  %v344 = vpack.c.b16 %v337, %v336
  %v345 = vpack.c.b16 %v339, %v338
  %v346 = vpack.c.b16 %v341, %v340
  %v347 = vpack.c.b16 %v343, %v342
  %vm352 = vcmask 523264
  %v354 = vsel %vm352, %v300, 0
  %v357 = vsel %vm352, %v301, 0
  %v360 = vsel %vm352, %v302, 0
  %v363 = vsel %vm352, %v303, 0
  %v366 = vsel %vm352, %v304, 0
  %v369 = vsel %vm352, %v305, 0
  %v372 = vsel %vm352, %v306, 0
  %v375 = vsel %vm352, %v307, 0
  %v378 = vsel %vm352, %v308, 0
  %v381 = vsel %vm352, %v309, 0
  %v384 = vsel %vm352, %v310, 0
  %v387 = vsel %vm352, %v311, 0
  %v390 = vsel %vm352, %v312, 0
  %392 = vmatprep.subr.bf16.mxu0 0
  %393 = vmatpush1.bf16.msra.mxu0 0
  %394 = vmatprep.subr.bf16.mxu0 0
  %395 = vmatpush1.bf16.msra.mxu0 0
  %396 = vmatprep.subr.bf16.mxu0 0
  %397 = vmatpush1.bf16.msra.mxu0 0
  %398 = vmatprep.subr.bf16.mxu0 0
  %399 = vmatpush1.bf16.msra.mxu0 0
  %400 = vmatprep.subr.bf16.mxu0 0
  %401 = vmatpush1.bf16.msra.mxu0 %v347
  %402 = vmatprep.subr.bf16.mxu0 0
  %403 = vmatpush1.bf16.msra.mxu0 %v346
  %404 = vmatprep.subr.bf16.mxu0 0
  %405 = vmatpush1.bf16.msra.mxu0 %v345
  %406 = vmatprep.subr.bf16.mxu0 0
  %407 = vmatpush1.bf16.msra.mxu0 %v344
  %408 = vmatprep.subr.bf16.mxu0 0
  %409 = vmatpush2.bf16.msra.mxu0 0
  %410 = vmatprep.subr.bf16.mxu0 0
  %411 = vmatpush2.bf16.msra.mxu0 0
  %412 = vmatprep.subr.bf16.mxu0 0
  %413 = vmatpush2.bf16.msra.mxu0 0
  %414 = vmatprep.subr.bf16.mxu0 0
  %415 = vmatpush2.bf16.msra.mxu0 0
  %416 = vmatprep.subr.bf16.mxu0 0
  %417 = vmatpush2.bf16.msra.mxu0 0
  %418 = vmatprep.subr.bf16.mxu0 0
  %419 = vmatpush2.bf16.msra.mxu0 0
  %420 = vmatprep.subr.bf16.mxu0 0
  %421 = vmatpush2.bf16.msra.mxu0 0
  %422 = vmatprep.subr.bf16.mxu0 0
  %423 = vmatpush2.bf16.msra.mxu0 0
  %424 = vmatprep.mubr.bf16.mxu0 0
  %425 = vmatmul.mubr.bf16.gmra.mxu0 %v354
  %v426 = vpop.f32.mrf.mxu0
  %v427 = vadd.f32 %v326, %v426
  %v428 = vpop.f32.mrf.mxu0
  %v429 = vpop.f32.mrf.mxu0
  %v430 = vadd.f32 %v326, %v429
  %v431 = vpop.f32.mrf.mxu0
  %432 = vmatprep.mubr.bf16.mxu0 0
  %433 = vmatmul.mubr.bf16.gmra.mxu0 %v357
  %v434 = vpop.f32.mrf.mxu0
  %v435 = vadd.f32 %v326, %v434
  %v436 = vpop.f32.mrf.mxu0
  %v437 = vpop.f32.mrf.mxu0
  %v438 = vadd.f32 %v326, %v437
  %v439 = vpop.f32.mrf.mxu0
  %440 = vmatprep.mubr.bf16.mxu0 0
  %441 = vmatmul.mubr.bf16.gmra.mxu0 %v360
  %v442 = vpop.f32.mrf.mxu0
  %v443 = vadd.f32 %v326, %v442
  %v444 = vpop.f32.mrf.mxu0
  %v445 = vpop.f32.mrf.mxu0
  %v446 = vadd.f32 %v326, %v445
  %v447 = vpop.f32.mrf.mxu0
  %448 = vmatprep.mubr.bf16.mxu0 0
  %449 = vmatmul.mubr.bf16.gmra.mxu0 %v363
  %v450 = vpop.f32.mrf.mxu0
  %v451 = vadd.f32 %v326, %v450
  %v452 = vpop.f32.mrf.mxu0
  %v453 = vpop.f32.mrf.mxu0
  %v454 = vadd.f32 %v326, %v453
  %v455 = vpop.f32.mrf.mxu0
  %456 = vmatprep.mubr.bf16.mxu0 0
  %457 = vmatmul.mubr.bf16.gmra.mxu0 %v366
  %v458 = vpop.f32.mrf.mxu0
  %v459 = vadd.f32 %v326, %v458
  %v460 = vpop.f32.mrf.mxu0
  %v461 = vpop.f32.mrf.mxu0
  %v462 = vadd.f32 %v326, %v461
  %v463 = vpop.f32.mrf.mxu0
  %464 = vmatprep.mubr.bf16.mxu0 0
  %465 = vmatmul.mubr.bf16.gmra.mxu0 %v369
  %v466 = vpop.f32.mrf.mxu0
  %v467 = vadd.f32 %v326, %v466
  %v468 = vpop.f32.mrf.mxu0
  %v469 = vpop.f32.mrf.mxu0
  %v470 = vadd.f32 %v326, %v469
  %v471 = vpop.f32.mrf.mxu0
  %472 = vmatprep.mubr.bf16.mxu0 0
  %473 = vmatmul.mubr.bf16.gmra.mxu0 %v372
  %v474 = vpop.f32.mrf.mxu0
  %v475 = vadd.f32 %v326, %v474
  %v476 = vpop.f32.mrf.mxu0
  %v477 = vpop.f32.mrf.mxu0
  %v478 = vadd.f32 %v326, %v477
  %v479 = vpop.f32.mrf.mxu0
  %480 = vmatprep.mubr.bf16.mxu0 0
  %481 = vmatmul.mubr.bf16.gmra.mxu0 %v375
  %v482 = vpop.f32.mrf.mxu0
  %v483 = vadd.f32 %v326, %v482
  %v484 = vpop.f32.mrf.mxu0
  %v485 = vpop.f32.mrf.mxu0
  %v486 = vadd.f32 %v326, %v485
  %v487 = vpop.f32.mrf.mxu0
  %488 = vmatprep.mubr.bf16.mxu0 0
  %489 = vmatmul.mubr.bf16.gmra.mxu0 %v378
  %v490 = vpop.f32.mrf.mxu0
  %v491 = vadd.f32 %v326, %v490
  %v492 = vpop.f32.mrf.mxu0
  %v493 = vpop.f32.mrf.mxu0
  %v494 = vadd.f32 %v326, %v493
  %v495 = vpop.f32.mrf.mxu0
  %496 = vmatprep.mubr.bf16.mxu0 0
  %497 = vmatmul.mubr.bf16.gmra.mxu0 %v381
  %v498 = vpop.f32.mrf.mxu0
  %v499 = vadd.f32 %v326, %v498
  %v500 = vpop.f32.mrf.mxu0
  %v501 = vpop.f32.mrf.mxu0
  %v502 = vadd.f32 %v326, %v501
  %v503 = vpop.f32.mrf.mxu0
  %504 = vmatprep.mubr.bf16.mxu0 0
  %505 = vmatmul.mubr.bf16.gmra.mxu0 %v384
  %v506 = vpop.f32.mrf.mxu0
  %v507 = vadd.f32 %v326, %v506
  %v508 = vpop.f32.mrf.mxu0
  %v509 = vpop.f32.mrf.mxu0
  %v510 = vadd.f32 %v326, %v509
  %v511 = vpop.f32.mrf.mxu0
  %512 = vmatprep.mubr.bf16.mxu0 0
  %513 = vmatmul.mubr.bf16.gmra.mxu0 %v387
  %v514 = vpop.f32.mrf.mxu0
  %v515 = vadd.f32 %v326, %v514
  %v516 = vpop.f32.mrf.mxu0
  %v517 = vpop.f32.mrf.mxu0
  %v518 = vadd.f32 %v326, %v517
  %v519 = vpop.f32.mrf.mxu0
  %520 = vmatprep.mubr.bf16.mxu0 0
  %521 = vmatmul.mubr.bf16.gmra.mxu0 %v390
  %v522 = vpop.f32.mrf.mxu0
  %v523 = vadd.f32 %v326, %v522
  %v524 = vpop.f32.mrf.mxu0
  %v525 = vpop.f32.mrf.mxu0
  %v526 = vpop.f32.mrf.mxu0
  %527 = vdwg.mxu0
  %v528 = vmax.f32 %v427, 0.0
  %v529 = vmax.f32 %v430, 0.0
  %v530 = vmax.f32 %v435, 0.0
  %v531 = vmax.f32 %v438, 0.0
  %v532 = vmax.f32 %v443, 0.0
  %v533 = vmax.f32 %v446, 0.0
  %v534 = vmax.f32 %v451, 0.0
  %v535 = vmax.f32 %v454, 0.0
  %v536 = vmax.f32 %v459, 0.0
  %v537 = vmax.f32 %v462, 0.0
  %v538 = vmax.f32 %v467, 0.0
  %v539 = vmax.f32 %v470, 0.0
  %v540 = vmax.f32 %v475, 0.0
  %v541 = vmax.f32 %v478, 0.0
  %v542 = vmax.f32 %v483, 0.0
  %v543 = vmax.f32 %v486, 0.0
  %v544 = vmax.f32 %v491, 0.0
  %v545 = vmax.f32 %v494, 0.0
  %v546 = vmax.f32 %v499, 0.0
  %v547 = vmax.f32 %v502, 0.0
  %v548 = vmax.f32 %v507, 0.0
  %v549 = vmax.f32 %v510, 0.0
  %v550 = vmax.f32 %v515, 0.0
  %v551 = vmax.f32 %v518, 0.0
  %v552 = vmax.f32 %v523, 0.0
  %v553 = vpack.c.bf16 %v529, %v528
  %v554 = vpack.c.bf16 %v531, %v530
  %v555 = vpack.c.bf16 %v533, %v532
  %v556 = vpack.c.bf16 %v535, %v534
  %v557 = vpack.c.bf16 %v537, %v536
  %v558 = vpack.c.bf16 %v539, %v538
  %v559 = vpack.c.bf16 %v541, %v540
  %v560 = vpack.c.bf16 %v543, %v542
  %v561 = vpack.c.bf16 %v545, %v544
  %v562 = vpack.c.bf16 %v547, %v546
  %v563 = vpack.c.bf16 %v549, %v548
  %v564 = vpack.c.bf16 %v551, %v550
  %v565 = vpack.c.bf16 %v552, %v552
  %v566 = vld [vmem:[%s5] sm:$0xf]
  %v567 = vld [vmem:[%s5 + $0x4] sm:$0xf]
  %v568 = vld [vmem:[%s5 + $0x8] sm:$0xf]
  %v569 = vld [vmem:[%s5 + $0xc] sm:$0xf]
  %v570 = vld [vmem:[%s6] sm:$0x1]
  %v572 = vlaneseq
  %v573 = vshrl.u32 %v572, 7
  %v574 = vsub.s32 0, %v573
  %v575 = vrot.slane %v570, %v574
  %v581 = vunpack.c.l.b16 %v566
  %v582 = vunpack.c.l.b16 %v567
  %v583 = vunpack.c.l.b16 %v568
  %v584 = vunpack.c.l.b16 %v569
  %v585 = vpack.c.b16 %v582, %v581
  %v586 = vpack.c.b16 %v584, %v583
  %vm589 = vcmask 261120
  %v591 = vsel %vm589, %v553, 0
  %v594 = vsel %vm589, %v554, 0
  %v597 = vsel %vm589, %v555, 0
  %v600 = vsel %vm589, %v556, 0
  %v603 = vsel %vm589, %v557, 0
  %v606 = vsel %vm589, %v558, 0
  %v609 = vsel %vm589, %v559, 0
  %v612 = vsel %vm589, %v560, 0
  %v615 = vsel %vm589, %v561, 0
  %v618 = vsel %vm589, %v562, 0
  %v621 = vsel %vm589, %v563, 0
  %v624 = vsel %vm589, %v564, 0
  %v627 = vsel %vm589, %v565, 0
  %629 = vmatprep.subr.bf16.mxu0 0
  %630 = vmatpush1.bf16.msra.mxu0 0
  %631 = vmatprep.subr.bf16.mxu0 0
  %632 = vmatpush1.bf16.msra.mxu0 0
  %633 = vmatprep.subr.bf16.mxu0 0
  %634 = vmatpush1.bf16.msra.mxu0 0
  %635 = vmatprep.subr.bf16.mxu0 0
  %636 = vmatpush1.bf16.msra.mxu0 0
  %637 = vmatprep.subr.bf16.mxu0 0
  %638 = vmatpush1.bf16.msra.mxu0 0
  %639 = vmatprep.subr.bf16.mxu0 0
  %640 = vmatpush1.bf16.msra.mxu0 0
  %641 = vmatprep.subr.bf16.mxu0 0
  %642 = vmatpush1.bf16.msra.mxu0 %v586
  %643 = vmatprep.subr.bf16.mxu0 0
  %644 = vmatpush1.bf16.msra.mxu0 %v585
  %645 = vmatprep.subr.bf16.mxu0 0
  %646 = vmatpush2.bf16.msra.mxu0 0
  %647 = vmatprep.subr.bf16.mxu0 0
  %648 = vmatpush2.bf16.msra.mxu0 0
  %649 = vmatprep.subr.bf16.mxu0 0
  %650 = vmatpush2.bf16.msra.mxu0 0
  %651 = vmatprep.subr.bf16.mxu0 0
  %652 = vmatpush2.bf16.msra.mxu0 0
  %653 = vmatprep.subr.bf16.mxu0 0
  %654 = vmatpush2.bf16.msra.mxu0 0
  %655 = vmatprep.subr.bf16.mxu0 0
  %656 = vmatpush2.bf16.msra.mxu0 0
  %657 = vmatprep.subr.bf16.mxu0 0
  %658 = vmatpush2.bf16.msra.mxu0 0
  %659 = vmatprep.subr.bf16.mxu0 0
  %660 = vmatpush2.bf16.msra.mxu0 0
  %661 = vmatprep.mubr.bf16.mxu0 0
  %662 = vmatmul.mubr.bf16.gmra.mxu0 %v591
  %v663 = vpop.f32.mrf.mxu0
  %v664 = vadd.f32 %v575, %v663
  %v665 = vpop.f32.mrf.mxu0
  %v666 = vpop.f32.mrf.mxu0
  %v667 = vadd.f32 %v575, %v666
  %v668 = vpop.f32.mrf.mxu0
  %669 = vmatprep.mubr.bf16.mxu0 0
  %670 = vmatmul.mubr.bf16.gmra.mxu0 %v594
  %v671 = vpop.f32.mrf.mxu0
  %v672 = vadd.f32 %v575, %v671
  %v673 = vpop.f32.mrf.mxu0
  %v674 = vpop.f32.mrf.mxu0
  %v675 = vadd.f32 %v575, %v674
  %v676 = vpop.f32.mrf.mxu0
  %677 = vmatprep.mubr.bf16.mxu0 0
  %678 = vmatmul.mubr.bf16.gmra.mxu0 %v597
  %v679 = vpop.f32.mrf.mxu0
  %v680 = vadd.f32 %v575, %v679
  %v681 = vpop.f32.mrf.mxu0
  %v682 = vpop.f32.mrf.mxu0
  %v683 = vadd.f32 %v575, %v682
  %v684 = vpop.f32.mrf.mxu0
  %685 = vmatprep.mubr.bf16.mxu0 0
  %686 = vmatmul.mubr.bf16.gmra.mxu0 %v600
  %v687 = vpop.f32.mrf.mxu0
  %v688 = vadd.f32 %v575, %v687
  %v689 = vpop.f32.mrf.mxu0
  %v690 = vpop.f32.mrf.mxu0
  %v691 = vadd.f32 %v575, %v690
  %v692 = vpop.f32.mrf.mxu0
  %693 = vmatprep.mubr.bf16.mxu0 0
  %694 = vmatmul.mubr.bf16.gmra.mxu0 %v603
  %v695 = vpop.f32.mrf.mxu0
  %v696 = vadd.f32 %v575, %v695
  %v697 = vpop.f32.mrf.mxu0
  %v698 = vpop.f32.mrf.mxu0
  %v699 = vadd.f32 %v575, %v698
  %v700 = vpop.f32.mrf.mxu0
  %701 = vmatprep.mubr.bf16.mxu0 0
  %702 = vmatmul.mubr.bf16.gmra.mxu0 %v606
  %v703 = vpop.f32.mrf.mxu0
  %v704 = vadd.f32 %v575, %v703
  %v705 = vpop.f32.mrf.mxu0
  %v706 = vpop.f32.mrf.mxu0
  %v707 = vadd.f32 %v575, %v706
  %v708 = vpop.f32.mrf.mxu0
  %709 = vmatprep.mubr.bf16.mxu0 0
  %710 = vmatmul.mubr.bf16.gmra.mxu0 %v609
  %v711 = vpop.f32.mrf.mxu0
  %v712 = vadd.f32 %v575, %v711
  %v713 = vpop.f32.mrf.mxu0
  %v714 = vpop.f32.mrf.mxu0
  %v715 = vadd.f32 %v575, %v714
  %v716 = vpop.f32.mrf.mxu0
  %717 = vmatprep.mubr.bf16.mxu0 0
  %718 = vmatmul.mubr.bf16.gmra.mxu0 %v612
  %v719 = vpop.f32.mrf.mxu0
  %v720 = vadd.f32 %v575, %v719
  %v721 = vpop.f32.mrf.mxu0
  %v722 = vpop.f32.mrf.mxu0
  %v723 = vadd.f32 %v575, %v722
  %v724 = vpop.f32.mrf.mxu0
  %725 = vmatprep.mubr.bf16.mxu0 0
  %726 = vmatmul.mubr.bf16.gmra.mxu0 %v615
  %v727 = vpop.f32.mrf.mxu0
  %v728 = vadd.f32 %v575, %v727
  %v729 = vpop.f32.mrf.mxu0
  %v730 = vpop.f32.mrf.mxu0
  %v731 = vadd.f32 %v575, %v730
  %v732 = vpop.f32.mrf.mxu0
  %733 = vmatprep.mubr.bf16.mxu0 0
  %734 = vmatmul.mubr.bf16.gmra.mxu0 %v618
  %v735 = vpop.f32.mrf.mxu0
  %v736 = vadd.f32 %v575, %v735
  %v737 = vpop.f32.mrf.mxu0
  %v738 = vpop.f32.mrf.mxu0
  %v739 = vadd.f32 %v575, %v738
  %v740 = vpop.f32.mrf.mxu0
  %741 = vmatprep.mubr.bf16.mxu0 0
  %742 = vmatmul.mubr.bf16.gmra.mxu0 %v621
  %v743 = vpop.f32.mrf.mxu0
  %v744 = vadd.f32 %v575, %v743
  %v745 = vpop.f32.mrf.mxu0
  %v746 = vpop.f32.mrf.mxu0
  %v747 = vadd.f32 %v575, %v746
  %v748 = vpop.f32.mrf.mxu0
  %749 = vmatprep.mubr.bf16.mxu0 0
  %750 = vmatmul.mubr.bf16.gmra.mxu0 %v624
  %v751 = vpop.f32.mrf.mxu0
  %v752 = vadd.f32 %v575, %v751
  %v753 = vpop.f32.mrf.mxu0
  %v754 = vpop.f32.mrf.mxu0
  %v755 = vadd.f32 %v575, %v754
  %v756 = vpop.f32.mrf.mxu0
  %757 = vmatprep.mubr.bf16.mxu0 0
  %758 = vmatmul.mubr.bf16.gmra.mxu0 %v627
  %v759 = vpop.f32.mrf.mxu0
  %v760 = vadd.f32 %v575, %v759
  %v761 = vpop.f32.mrf.mxu0
  %v762 = vpop.f32.mrf.mxu0
  %v763 = vpop.f32.mrf.mxu0
  %764 = vdwg.mxu0
  %vm765 = vcmask 130048
  %766 = vst.msk [vmem:[%s7] sm:$0xff] %vm765, %v664
  %767 = vst.msk [vmem:[%s7 + $0x8] sm:$0xff] %vm765, %v667
  %768 = vst.msk [vmem:[%s7 + $0x10] sm:$0xff] %vm765, %v672
  %769 = vst.msk [vmem:[%s7 + $0x18] sm:$0xff] %vm765, %v675
  %770 = vst.msk [vmem:[%s7 + $0x20] sm:$0xff] %vm765, %v680
  %771 = vst.msk [vmem:[%s7 + $0x28] sm:$0xff] %vm765, %v683
  %772 = vst.msk [vmem:[%s7 + $0x30] sm:$0xff] %vm765, %v688
  %773 = vst.msk [vmem:[%s7 + $0x38] sm:$0xff] %vm765, %v691
  %774 = vst.msk [vmem:[%s7 + $0x40] sm:$0xff] %vm765, %v696
  %775 = vst.msk [vmem:[%s7 + $0x48] sm:$0xff] %vm765, %v699
  %776 = vst.msk [vmem:[%s7 + $0x50] sm:$0xff] %vm765, %v704
  %777 = vst.msk [vmem:[%s7 + $0x58] sm:$0xff] %vm765, %v707
  %778 = vst.msk [vmem:[%s7 + $0x60] sm:$0xff] %vm765, %v712
  %779 = vst.msk [vmem:[%s7 + $0x68] sm:$0xff] %vm765, %v715
  %780 = vst.msk [vmem:[%s7 + $0x70] sm:$0xff] %vm765, %v720
  %781 = vst.msk [vmem:[%s7 + $0x78] sm:$0xff] %vm765, %v723
  %782 = vst.msk [vmem:[%s7 + $0x80] sm:$0xff] %vm765, %v728
  %783 = vst.msk [vmem:[%s7 + $0x88] sm:$0xff] %vm765, %v731
  %784 = vst.msk [vmem:[%s7 + $0x90] sm:$0xff] %vm765, %v736
  %785 = vst.msk [vmem:[%s7 + $0x98] sm:$0xff] %vm765, %v739
  %786 = vst.msk [vmem:[%s7 + $0xa0] sm:$0xff] %vm765, %v744
  %787 = vst.msk [vmem:[%s7 + $0xa8] sm:$0xff] %vm765, %v747
  %788 = vst.msk [vmem:[%s7 + $0xb0] sm:$0xff] %vm765, %v752
  %789 = vst.msk [vmem:[%s7 + $0xb8] sm:$0xff] %vm765, %v755
  %790 = vst.msk [vmem:[%s7 + $0xc0] sm:$0xff] %vm765, %v760
  // Predicated region
  $region30: #{tpu_custom_call.1} parent=0 // pred_check
    _
  $region31: #{tpu_custom_call.1} parent=0 // pred_check_branch
    %792 = sbr.rel (0) target = $region33
  $region32: #{tpu_custom_call.1} parent=0 // pred_region
    _
  $region33: #{tpu_custom_call.1} parent=0 // pred_fallthru
    _
  // Predicated region
  $region34: #{tpu_custom_call.1} parent=0 // pred_check
    _
  $region35: #{tpu_custom_call.1} parent=0 // pred_check_branch
    %794 = sbr.rel (0) target = $region37
  $region36: #{tpu_custom_call.1} parent=0 // pred_region
    _
  $region37: #{tpu_custom_call.1} parent=0 // pred_fallthru
    _

</llo_original>
